<compile_context>
chip_gen: v7x
topology: tpu7x:2x2x1
jax: 0.10.0
libtpu: 0.0.40
codegen_flags: <defaults>
</compile_context>

<pallas_src>
import functools

import numpy as np

import jax
import jax.numpy as jnp
from jax.experimental import pallas as pl
from jax.experimental.pallas import tpu as pltpu


def make_interpolation_weights(seq_len: int, factor: int) -> np.ndarray:
    """Replicates DenseInterpolation.__init__: W has shape (factor, seq_len)."""
    W = np.zeros((factor, seq_len), dtype=np.float32)
    for t in range(seq_len):
        s = np.float32(factor * (t + 1) / seq_len)
        for m in range(factor):
            tmp = np.float32(1.0 - np.abs(s - (1 + m)) / factor)
            W[m, t] = np.float32(tmp) ** 2
    return W


def _cdiv(a: int, b: int) -> int:
    return -(-a // b)


def _round_up(a: int, m: int) -> int:
    return ((a + m - 1) // m) * m


def _largest_divisor_tile(total: int, max_tile: int, multiple: int):
    """Largest divisor of `total` that is <= max_tile and a multiple of `multiple`."""
    best = None
    t = multiple
    limit = min(total, max_tile)
    while t <= limit:
        if total % t == 0:
            best = t
        t += multiple
    return best


def _dense_interp_kernel(w_ref, x_ref, u_ref, acc_ref, *, compute_dtype=None):
    # w_ref:   (factor, ts)        -- S-tile of the interpolation weights
    # x_ref:   (TB, ts, D)         -- batch x seq tile of the activations
    # u_ref:   (TB, factor, D)     -- lane-dense output block (resident across k)
    # acc_ref: (TB, factor, D) f32 -- VMEM accumulator over the S (k) axis
    k = pl.program_id(1)

    @pl.when(k == 0)
    def _init():
        acc_ref[...] = jnp.zeros_like(acc_ref)

    w = w_ref[...]
    xt = x_ref[...]
    if compute_dtype is not None:
        w = w.astype(compute_dtype)
        xt = xt.astype(compute_dtype)

    tb = xt.shape[0]
    # Tiny W replicated over the batch tile -> single batched MXU contraction
    # (shared leading batch dim), f32 accumulation, ideal (M,K)@(K,N) orientation.
    wb = jnp.broadcast_to(w, (tb,) + w.shape)          # (TB, factor, ts)
    acc_ref[...] += jnp.einsum(
        "bms,bsd->bmd", wb, xt, preferred_element_type=jnp.float32)

    @pl.when(k == pl.num_programs(1) - 1)
    def _store():
        u_ref[...] = acc_ref[...].astype(u_ref.dtype)


def dense_interpolation(
    x,
    *,
    factor,
    weights=None,
    batch_tile_bytes=8 << 20,   # ~8 MiB x blocks (feedback: 6-16 MiB amortizes step overhead)
    compute_dtype=None,         # e.g. jnp.bfloat16 on v7x if accuracy allows
    x_buffers=2,                # >2 -> pl.Buffered(x_buffers) on the x input
    transpose_output=True,      # False: return (B, factor, D) and skip the HBM transpose
):
    """Pallas equivalent of DenseInterpolation.forward.

    x:       (B, seq_len, d_model), any float dtype (kept native).
    returns: (B, d_model, factor) -- same as torch's u.transpose_(1, 2)
             (or (B, factor, d_model) when transpose_output=False).
    """
    B, S, D = (int(d) for d in x.shape)
    factor = int(factor)
    if weights is None:
        weights = make_interpolation_weights(S, factor)
    # Keep W float32 when x is float32 (parity with the torch buffer); only
    # down-cast W when x itself is lower precision so MXU operand dtypes match.
    w_dtype = jnp.float32 if x.dtype == jnp.dtype(jnp.float32) else x.dtype
    w = jnp.asarray(weights, dtype=w_dtype)            # (factor, S)

    itemsize = x.dtype.itemsize
    lane, sub = 128, 8
    budget = int(batch_tile_bytes)
    padded_row = _round_up(D, lane) * itemsize         # one seq row as laid out in VMEM

    # ---- seq_len (contraction) tiling -------------------------------------------
    # Only tile S when one full-S batch row does not fit the per-block budget
    # (keeps large S*D shapes inside v7x's 64 MiB VMEM).  Contraction tiles must
    # divide S exactly (padded blocks would corrupt the accumulation) and be
    # 128-aligned because W's block carries S on the lane axis.
    if _round_up(S, sub) * padded_row <= budget:
        ts = S
    else:
        max_ts = max(1, budget // padded_row)
        ts = _largest_divisor_tile(S, max_ts, lane) or S
        # TODO(synk): if S has no 128-aligned divisor under the budget we fall back
        # to ts == S and simply raise the VMEM limit below.
    x_block_bytes = _round_up(ts, sub) * padded_row    # per batch element, VMEM-padded

    # ---- batch tiling -------------------------------------------------------------
    tb = int(max(1, min(B, budget // max(x_block_bytes, 1))))
    num_bt = _cdiv(B, tb)
    if num_bt < 2 <= B:
        # Keep >= 2 batch tiles so both v7x TensorCores receive work.
        tb = _cdiv(B, 2)
        num_bt = _cdiv(B, tb)
    num_st = S // ts
    grid = (num_bt, num_st)

    # ---- explicit VMEM budget (double-buffered blocks + accumulator) --------------
    w_block_bytes = _round_up(factor, sub) * _round_up(ts, lane) * w.dtype.itemsize
    out_block_bytes = tb * _round_up(factor, sub) * _round_up(D, lane) * itemsize
    acc_bytes = tb * _round_up(factor, sub) * _round_up(D, lane) * 4
    vmem_need = 2 * (tb * x_block_bytes + w_block_bytes + out_block_bytes) + acc_bytes
    vmem_limit = int(min(max(vmem_need * 3 // 2 + (1 << 20), 16 << 20), 64 << 20))

    x_spec_kwargs = {}
    if x_buffers and int(x_buffers) > 2:
        x_spec_kwargs["pipeline_mode"] = pl.Buffered(int(x_buffers))
    x_spec = pl.BlockSpec((tb, ts, D), lambda i, k: (i, k, 0), **x_spec_kwargs)

    flops = 2 * B * factor * S * D
    bytes_accessed = (B * S * D * itemsize
                      + factor * S * w.dtype.itemsize
                      + B * factor * D * itemsize)

    kernel = functools.partial(_dense_interp_kernel, compute_dtype=compute_dtype)

    u = pl.pallas_call(
        kernel,
        out_shape=jax.ShapeDtypeStruct((B, factor, D), x.dtype),
        grid_spec=pltpu.PrefetchScalarGridSpec(
            num_scalar_prefetch=0,
            grid=grid,
            in_specs=[
                pl.BlockSpec((factor, ts), lambda i, k: (0, k)),   # W tile (resident if num_st==1)
                x_spec,                                            # x batch x seq tile
            ],
            out_specs=pl.BlockSpec((tb, factor, D), lambda i, k: (i, 0, 0)),
            scratch_shapes=[pltpu.VMEM((tb, factor, D), jnp.float32)],
        ),
        compiler_params=pltpu.CompilerParams(
            dimension_semantics=("parallel", "arbitrary"),
            vmem_limit_bytes=vmem_limit,
        ),
        cost_estimate=pl.CostEstimate(
            flops=flops, transcendentals=0, bytes_accessed=bytes_accessed),
    )(w, x)

    if transpose_output:
        # torch returns u.transpose_(1, 2): (B, d_model, factor).  This touches only
        # the reduced tensor (~2*factor/S of the input HBM traffic); consumers that
        # accept (B, factor, D) should pass transpose_output=False and skip it.
        return jnp.swapaxes(u, 1, 2)
    return u


if __name__ == "__main__":
    batch, seq_len, d_model, factor = 2, 8, 32, 4

    key = jax.random.PRNGKey(0)
    x = jax.random.normal(key, (batch, seq_len, d_model), dtype=jnp.float32)

    out = dense_interpolation(x, factor=factor)
    out = jax.block_until_ready(out)

    # Pure-JAX reference identical to the PyTorch forward:
    #   u = bmm(W, x); return u.transpose(1, 2)
    W = jnp.asarray(make_interpolation_weights(seq_len, factor))
    ref = jnp.einsum("ms,bsd->bdm", W, x)

    assert out.shape == (batch, d_model, factor), out.shape
    assert jnp.allclose(out, ref, atol=1e-5, rtol=1e-5)

    print("KERNEL_OK")
</pallas_src>

<mosaic_0001>
module attributes {stable_mosaic.version = 11 : i64} {
  func.func @_dense_interp_kernel(%arg0: i32, %arg1: i32, %arg2: memref<4x8xf32, #tpu.memory_space<vmem>>, %arg3: memref<1x8x32xf32, #tpu.memory_space<vmem>>, %arg4: memref<1x4x32xf32, #tpu.memory_space<vmem>>, %arg5: memref<1x4x32xf32, #tpu.memory_space<vmem>>) attributes {dimension_semantics = [#tpu.dimension_semantics<parallel>, #tpu.dimension_semantics<arbitrary>], iteration_bounds = array<i64: 2, 1>, scalar_prefetch = 0 : i64, scratch_operands = 1 : i64, tpu.core_type = #tpu.core_type<tc>, window_params = [{transform_indices = @transform_0, window_bounds = array<i64: 4, 8>}, {transform_indices = @transform_1, window_bounds = array<i64: 1, 8, 32>}, {transform_indices = @transform_2, window_bounds = array<i64: 1, 4, 32>}]} {
    %c0_i32 = arith.constant 0 : i32
    %0 = arith.cmpi eq, %arg1, %c0_i32 : i32
    %1 = arith.extui %0 : i1 to i32
    %c0_i32_0 = arith.constant 0 : i32
    %2 = arith.cmpi ne, %1, %c0_i32_0 : i32
    scf.if %2 {
      %cst_13 = arith.constant 0.000000e+00 : f32
      %13 = vector.broadcast %cst_13 : f32 to vector<1x4x32xf32>
      %c0_14 = arith.constant 0 : index
      %c0_15 = arith.constant 0 : index
      %c0_16 = arith.constant 0 : index
      %14 = vector.load %arg5[%c0_14, %c0_15, %c0_16] : memref<1x4x32xf32, #tpu.memory_space<vmem>>, vector<1x4x32xf32>
      tpu.vector_store %arg5[%c0_14, %c0_15, %c0_16], %13 {strides = array<i32>} : memref<1x4x32xf32, #tpu.memory_space<vmem>>, vector<1x4x32xf32>,
    } else {
    }
    %c0 = arith.constant 0 : index
    %c0_1 = arith.constant 0 : index
    %3 = vector.load %arg2[%c0, %c0_1] : memref<4x8xf32, #tpu.memory_space<vmem>>, vector<4x8xf32>
    %c0_2 = arith.constant 0 : index
    %c0_3 = arith.constant 0 : index
    %c0_4 = arith.constant 0 : index
    %4 = vector.load %arg3[%c0_2, %c0_3, %c0_4] : memref<1x8x32xf32, #tpu.memory_space<vmem>>, vector<1x8x32xf32>
    %5 = vector.shape_cast %3 : vector<4x8xf32> to vector<1x4x8xf32>
    %c0_5 = arith.constant 0 : index
    %c0_6 = arith.constant 0 : index
    %c0_7 = arith.constant 0 : index
    %6 = vector.load %arg5[%c0_5, %c0_6, %c0_7] : memref<1x4x32xf32, #tpu.memory_space<vmem>>, vector<1x4x32xf32>
    "tpu.trace_start"() <{level = 10 : i32, message = "bms,bsd->bmd"}> : () -> ()
    %cst = arith.constant dense<0.000000e+00> : vector<1x4x32xf32>
    %7 = tpu.matmul %5, %4, %cst {dimension_numbers = #tpu.dot_dimension_numbers<[2], [1], [1], [2], [0, 0, 0, 1, 1, 2], [0], [0]>} : vector<1x4x8xf32>, vector<1x8x32xf32>, vector<1x4x32xf32> -> vector<1x4x32xf32>
    "tpu.trace_stop"() : () -> ()
    %8 = arith.addf %6, %7 : vector<1x4x32xf32>
    %c0_8 = arith.constant 0 : index
    %c0_9 = arith.constant 0 : index
    %c0_10 = arith.constant 0 : index
    %9 = vector.load %arg5[%c0_8, %c0_9, %c0_10] : memref<1x4x32xf32, #tpu.memory_space<vmem>>, vector<1x4x32xf32>
    tpu.vector_store %arg5[%c0_8, %c0_9, %c0_10], %8 {strides = array<i32>} : memref<1x4x32xf32, #tpu.memory_space<vmem>>, vector<1x4x32xf32>,
    %c0_i32_11 = arith.constant 0 : i32
    %10 = arith.cmpi eq, %arg1, %c0_i32_11 : i32
    %11 = arith.extui %10 : i1 to i32
    %c0_i32_12 = arith.constant 0 : i32
    %12 = arith.cmpi ne, %11, %c0_i32_12 : i32
    scf.if %12 {
      %c0_13 = arith.constant 0 : index
      %c0_14 = arith.constant 0 : index
      %c0_15 = arith.constant 0 : index
      %13 = vector.load %arg5[%c0_13, %c0_14, %c0_15] : memref<1x4x32xf32, #tpu.memory_space<vmem>>, vector<1x4x32xf32>
      %c0_16 = arith.constant 0 : index
      %c0_17 = arith.constant 0 : index
      %c0_18 = arith.constant 0 : index
      %14 = vector.load %arg4[%c0_16, %c0_17, %c0_18] : memref<1x4x32xf32, #tpu.memory_space<vmem>>, vector<1x4x32xf32>
      tpu.vector_store %arg4[%c0_16, %c0_17, %c0_18], %13 {strides = array<i32>} : memref<1x4x32xf32, #tpu.memory_space<vmem>>, vector<1x4x32xf32>,
    } else {
    }
    return
  }
  func.func @transform_0(%arg0: i32, %arg1: i32) -> (i32, i32) {
    %c0_i32 = arith.constant 0 : i32
    %c0_i32_0 = arith.constant 0 : i32
    return %c0_i32, %arg1 : i32, i32
  }
  func.func @transform_1(%arg0: i32, %arg1: i32) -> (i32, i32, i32) {
    %c0_i32 = arith.constant 0 : i32
    %c0_i32_0 = arith.constant 0 : i32
    return %arg0, %arg1, %c0_i32 : i32, i32, i32
  }
  func.func @transform_2(%arg0: i32, %arg1: i32) -> (i32, i32, i32) {
    %c0_i32 = arith.constant 0 : i32
    %c0_i32_0 = arith.constant 0 : i32
    %c0_i32_1 = arith.constant 0 : i32
    return %arg0, %c0_i32, %c0_i32_0 : i32, i32, i32
  }
}

</mosaic_0001>

<llo_original>
// kernel: tpu_custom_call.1
$region0: #{tpu_custom_call.1}
  #allocation0 [shape = 'u32[]', space=smem, size = 0x4, offset = 0x4, fixed_abs, tag = 'smem constant byte address 0x4 - core index']
  #allocation1 [shape = 'u32[144,128]{1,0:T(1,128)}', space=vmem, size = 0x12000, scoped, tag = 'internal scratch']
  #allocation2 [shape = 'f32[1,4,32]{2,1,0:T(4,128)}', space=vmem, size = 0x800, scoped, tag = 'scratch operand']
  %s0 = inlined_call_operand.hbm [shape: f32[4,8], index: 0, kind: input, shape index: {}]
  %s1 = inlined_call_operand.hbm [shape: f32[2,8,32], index: 1, kind: input, shape index: {}]
  %s2 = inlined_call_operand.hbm [shape: f32[2,4,32], index: 2, kind: output, shape index: {}]
  %s3 = sld [smem:[#allocation0]]
  $region57: #{tpu_custom_call.1} parent=0
    _
  %s5 = ssub.s32 1, %s3
  %s6 = scalar_select 0, %s5, %s3
  $region1: #{tpu_custom_call.1} parent=0
    #allocation3 [shape = 'u8[2048]{0}', space=vmem, size = 0x800, scoped, tag = 'input window, operand 0, single buffered']
    #allocation4 [shape = 's32[2]{0}', space=sflag, size = 0x8, scoped, tag = 'scoped memory for tpu_custom_call.1']
    #allocation5 [shape = 's32[2]{0}', space=sflag, size = 0x8, scoped, tag = 'scoped memory for tpu_custom_call.1']
    #allocation6 [shape = 'u8[8192]{0}', space=vmem, size = 0x2000, scoped, tag = 'input window, operand 1']
    #allocation7 [shape = 's32[2]{0}', space=sflag, size = 0x8, scoped, tag = 'scoped memory for tpu_custom_call.1']
    #allocation8 [shape = 'u8[4096]{0}', space=vmem, size = 0x1000, scoped, tag = 'output window, operand 0']
    %7 = vsyncpa [#allocation4], 0
    %8 = vsyncpa [#allocation7], 0
    %s9 = scalar_lea.sflag [#allocation7], 1
    %10 = vsyncpa %s9, 0
    %11 = vsyncpa [#allocation5], 0
    %s12 = scalar_lea.sflag [#allocation5], 1
    %13 = vsyncpa %s12, 0
    loop: start=0, step=1, limit=4
    $region2: #{tpu_custom_call.1} parent=1 // loop_pre_header
      _
    $region3: #{tpu_custom_call.1} parent=1 // loop_header
      %s15 = sphi 0, %s19
      %p16 = scmp.ge.s32.totalorder %s15, 4
      %s22 = sphi 0, %s34
      %s23 = sphi 0, %s30
      %s24 = sphi 0, %s22
      %s25 = sphi 0, %s23
      %s26 = sphi 0, %s24
      %s27 = sphi 0, %s25
      %s37 = sphi 0, %s39
      %s40 = sphi 0, %s37
      %s41 = sphi 0, %s40
      %s57 = sphi 0, %s41
      %s65 = sphi 0, %s67
      %s68 = sphi 0, %s65
      %s69 = sphi 0, %s68
      %s85 = sphi 0, %s69
      %s91 = sphi 0, %s93
      %s94 = sphi 0, %s91
      %s95 = sphi 0, %s94
      %s111 = sphi 0, %s95
    $region4: #{tpu_custom_call.1} parent=1 // loop_header_branch
      %18 = sbr.rel (%p16) target = $region8
    $region5: #{tpu_custom_call.1} parent=1 // loop_body
      %s20 = ssub.s32 %s15, 1
      %s21 = ssub.s32 %s15, 2
      %s28 = sadd.s32 1, %s23
      %p29 = scmp.ge.s32.totalorder %s28, 1
      %s30 = scalar_select %p29, 0, %s28
      %s31 = sadd.s32 1, %s22
      %s32 = scalar_select %p29, %s31, %s22
      %p33 = scmp.ge.s32.totalorder %s32, 2
      %s34 = scalar_select %p33, 0, %s32
      %s35 = ssub.s32 %s23, %s30
      %p36 = scmp.eq.s32.totalorder %s35, 0
      %s38 = sadd.s32 %s37, 1
      %s39 = scalar_select %p36, %s37, %s38
      %p42 = pneg %p36
      %p43 = scmp.eq.s32.totalorder %s15, 1
      %p44 = por %p42, %p43
      %p45 = scmp.ne.s32.totalorder %s37, %s40
      %p46 = scmp.eq.s32.totalorder %s15, 0
      %p47 = por %p45, %p46
      %p48 = scmp.ne.s32.totalorder %s37, %s40
      %p49 = scmp.eq.s32.totalorder %s20, 1
      %p50 = por %p48, %p49
      %p51 = scmp.ne.s32.totalorder %s40, %s41
      %p52 = scmp.eq.s32.totalorder %s20, 0
      %p53 = por %p51, %p52
      %p54 = scmp.ne.s32.totalorder %s40, %s41
      %p55 = scmp.eq.s32.totalorder %s21, 1
      %p56 = por %p54, %p55
      %p58 = scmp.ne.s32.totalorder %s41, %s57
      %p59 = scmp.eq.s32.totalorder %s21, 0
      %p60 = por %p58, %p59
      %s61 = ssub.s32 %s22, %s34
      %s62 = ssub.s32 %s23, %s30
      %s63 = sor.u32 %s61, %s62
      %p64 = scmp.eq.s32.totalorder %s63, 0
      %s66 = sadd.s32 %s65, 1
      %s67 = scalar_select %p64, %s65, %s66
      %p70 = pneg %p64
      %p71 = scmp.eq.s32.totalorder %s15, 1
      %p72 = por %p70, %p71
      %p73 = scmp.ne.s32.totalorder %s65, %s68
      %p74 = scmp.eq.s32.totalorder %s15, 0
      %p75 = por %p73, %p74
      %p76 = scmp.ne.s32.totalorder %s65, %s68
      %p77 = scmp.eq.s32.totalorder %s20, 1
      %p78 = por %p76, %p77
      %p79 = scmp.ne.s32.totalorder %s68, %s69
      %p80 = scmp.eq.s32.totalorder %s20, 0
      %p81 = por %p79, %p80
      %p82 = scmp.ne.s32.totalorder %s68, %s69
      %p83 = scmp.eq.s32.totalorder %s21, 1
      %p84 = por %p82, %p83
      %p86 = scmp.ne.s32.totalorder %s69, %s85
      %p87 = scmp.eq.s32.totalorder %s21, 0
      %p88 = por %p86, %p87
      %s89 = ssub.s32 %s22, %s34
      %p90 = scmp.eq.s32.totalorder %s89, 0
      %s92 = sadd.s32 %s91, 1
      %s93 = scalar_select %p90, %s91, %s92
      %p96 = pneg %p90
      %p97 = scmp.eq.s32.totalorder %s15, 1
      %p98 = por %p96, %p97
      %p99 = scmp.ne.s32.totalorder %s91, %s94
      %p100 = scmp.eq.s32.totalorder %s15, 0
      %p101 = por %p99, %p100
      %p102 = scmp.ne.s32.totalorder %s91, %s94
      %p103 = scmp.eq.s32.totalorder %s20, 1
      %p104 = por %p102, %p103
      %p105 = scmp.ne.s32.totalorder %s94, %s95
      %p106 = scmp.eq.s32.totalorder %s20, 0
      %p107 = por %p105, %p106
      %p108 = scmp.ne.s32.totalorder %s94, %s95
      %p109 = scmp.eq.s32.totalorder %s21, 1
      %p110 = por %p108, %p109
      %p112 = scmp.ne.s32.totalorder %s95, %s111
      %p113 = scmp.eq.s32.totalorder %s21, 0
      %p114 = por %p112, %p113
      %p115 = scmp.le.s32.totalorder 1, %s15
      %p116 = scmp.lt.s32.totalorder %s15, 3
      %p117 = pnand %p115, %p116
      %p118 = pneg %p117
      // Predicated region
      $region9: #{tpu_custom_call.1} parent=5 // pred_check
        _
      $region10: #{tpu_custom_call.1} parent=5 // pred_check_branch
        %120 = sbr.rel (%p117) target = $region12
      $region11: #{tpu_custom_call.1} parent=5 // pred_region
        %s121 = ssub.s32 %s15, 1
        // Predicated region
        $region13: #{tpu_custom_call.1} parent=11 // pred_check
          %p122 = pneg %p53
        $region14: #{tpu_custom_call.1} parent=11 // pred_check_branch
          %124 = sbr.rel (%p122) target = $region16
        $region15: #{tpu_custom_call.1} parent=11 // pred_region
          %s126 = ssub.s32 64, 64
          %127 = vsyncadd [#allocation4], %s126
          %s128 = smul.addr %s25, 64
          %s129 = scalar_lea.hbm %s0, %s128
          %s131 = sshll.u32 [#allocation3], 4
          %s132 = int_to_ptr.vmem [resolvable:$true] %s131
          %134 = dma.hbm_to_vmem [thread:$0]  %s129, 64, %s132, [#allocation4]
        $region16: #{tpu_custom_call.1} parent=11 // pred_fallthru
          _
      $region12: #{tpu_custom_call.1} parent=5 // pred_fallthru
        _
      %p135 = scmp.lt.s32.totalorder %s15, 2
      // Predicated region
      $region17: #{tpu_custom_call.1} parent=5 // pred_check
        %p136 = pneg %p135
      $region18: #{tpu_custom_call.1} parent=5 // pred_check_branch
        %138 = sbr.rel (%p136) target = $region20
      $region19: #{tpu_custom_call.1} parent=5 // pred_region
        // Predicated region
        $region21: #{tpu_custom_call.1} parent=19 // pred_check
          %p139 = pneg %p75
        $region22: #{tpu_custom_call.1} parent=19 // pred_check_branch
          %141 = sbr.rel (%p139) target = $region24
        $region23: #{tpu_custom_call.1} parent=19 // pred_region
          %s142 = sand.u32 %s65, 1
          %s143 = scalar_lea.sflag [#allocation7], %s142
          %s144 = sand.u32 %s65, 1
          %s145 = smul.addr %s144, 8
          %s146 = scalar_lea.vmem [#allocation6], %s145
          %s148 = ssub.s32 128, 128
          %149 = vsyncadd %s143, %s148
          %s150 = sadd.s32 %s23, %s22
          %s151 = smul.addr %s150, 128
          %s152 = scalar_lea.hbm %s1, %s151
          %s154 = sshll.u32 %s146, 4
          %s155 = int_to_ptr.vmem [resolvable:$true] %s154
          %157 = dma.hbm_to_vmem [thread:$0]  %s152, 128, %s155, %s143
        $region24: #{tpu_custom_call.1} parent=19 // pred_fallthru
          _
      $region20: #{tpu_custom_call.1} parent=5 // pred_fallthru
        _
      %p158 = scmp.le.s32.totalorder 1, %s15
      %p159 = scmp.lt.s32.totalorder %s15, 3
      %p160 = pnand %p158, %p159
      %p161 = pneg %p160
      // Predicated region
      $region25: #{tpu_custom_call.1} parent=5 // pred_check
        _
      $region26: #{tpu_custom_call.1} parent=5 // pred_check_branch
        %163 = sbr.rel (%p160) target = $region28
      $region27: #{tpu_custom_call.1} parent=5 // pred_region
        %s164 = ssub.s32 %s15, 1
        // Predicated region
        $region29: #{tpu_custom_call.1} parent=27 // pred_check
          %p165 = pneg %p53
        $region30: #{tpu_custom_call.1} parent=27 // pred_check_branch
          %167 = sbr.rel (%p165) target = $region32
        $region31: #{tpu_custom_call.1} parent=27 // pred_region
          %168 = dma.done [#allocation4], 64
        $region32: #{tpu_custom_call.1} parent=27 // pred_fallthru
          _
        %s169 = sand.u32 %s68, 1
        %s170 = scalar_lea.sflag [#allocation7], %s169
        %s171 = sand.u32 %s68, 1
        %s172 = smul.addr %s171, 8
        %s173 = scalar_lea.vmem [#allocation6], %s172
        // Predicated region
        $region33: #{tpu_custom_call.1} parent=27 // pred_check
          %p174 = pneg %p81
        $region34: #{tpu_custom_call.1} parent=27 // pred_check_branch
          %176 = sbr.rel (%p174) target = $region36
        $region35: #{tpu_custom_call.1} parent=27 // pred_region
          %177 = dma.done %s170, 128
        $region36: #{tpu_custom_call.1} parent=27 // pred_fallthru
          _
        %p178 = pneg %p53
        %p179 = pneg %p50
        %s180 = sand.u32 %s68, 1
        %s181 = scalar_lea.sflag [#allocation7], %s180
        %s182 = sand.u32 %s68, 1
        %s183 = smul.addr %s182, 8
        %s184 = scalar_lea.vmem [#allocation6], %s183
        %p185 = pneg %p81
        %p186 = pneg %p78
        %p187 = pneg %p107
        %p188 = pneg %p104
        %s189 = sand.u32 %s94, 1
        %s190 = scalar_lea.sflag [#allocation5], %s189
        %s191 = sand.u32 %s94, 1
        %s192 = smul.addr %s191, 4
        %s193 = scalar_lea.vmem [#allocation8], %s192
        %p194 = scmp.eq.s32.totalorder %s25, 0
        // Predicated region
        $region37: #{tpu_custom_call.1} parent=27 // pred_check
          %p195 = pneg %p194
        $region38: #{tpu_custom_call.1} parent=27 // pred_check_branch
          %197 = sbr.rel (%p195) target = $region40
        $region39: #{tpu_custom_call.1} parent=27 // pred_region
          %vm198 = vcmask 257024
          %199 = vst.msk [vmem:[#allocation2] sm:$0xf] %vm198, 0.0
        $region40: #{tpu_custom_call.1} parent=27 // pred_fallthru
          _
        %v200 = vld [vmem:[#allocation3] sm:$0xf]
        %v201 = vld [vmem:[%s173] sm:$0xff]
        %v202 = vld [vmem:[#allocation2] sm:$0xf]
        %vm203 = vcmask 64512
        %v205 = vsel %vm203, %v200, 0
        %207 = vmatprep.subr.mxu0 0.0
        %208 = vmatpush1.msra.mxu0 %v201
        %209 = vmatprep.subr.mxu0 0.0
        %210 = vmatpush1.msra.mxu0 0.0
        %211 = vmatprep.subr.mxu0 0.0
        %212 = vmatpush1.msra.mxu0 0.0
        %213 = vmatprep.subr.mxu0 0.0
        %214 = vmatpush1.msra.mxu0 0.0
        %215 = vmatprep.subr.mxu0 0.0
        %216 = vmatpush1.msra.mxu0 0.0
        %217 = vmatprep.subr.mxu0 0.0
        %218 = vmatpush1.msra.mxu0 0.0
        %219 = vmatprep.subr.mxu0 0.0
        %220 = vmatpush1.msra.mxu0 0.0
        %221 = vmatprep.subr.mxu0 0.0
        %222 = vmatpush1.msra.mxu0 0.0
        %223 = vmatprep.subr.mxu0 0.0
        %224 = vmatpush1.msra.mxu0 0.0
        %225 = vmatprep.subr.mxu0 0.0
        %226 = vmatpush1.msra.mxu0 0.0
        %227 = vmatprep.subr.mxu0 0.0
        %228 = vmatpush1.msra.mxu0 0.0
        %229 = vmatprep.subr.mxu0 0.0
        %230 = vmatpush1.msra.mxu0 0.0
        %231 = vmatprep.subr.mxu0 0.0
        %232 = vmatpush1.msra.mxu0 0.0
        %233 = vmatprep.subr.mxu0 0.0
        %234 = vmatpush1.msra.mxu0 0.0
        %235 = vmatprep.subr.mxu0 0.0
        %236 = vmatpush1.msra.mxu0 0.0
        %237 = vmatprep.subr.mxu0 0.0
        %238 = vmatpush1.msra.mxu0 0.0
        %239 = vmatprep.subr.mxu0 0.0
        %240 = vmatpush1.msra.mxu0 0.0
        %241 = vmatprep.subr.mxu0 0.0
        %242 = vmatpush1.msra.mxu0 0.0
        %243 = vmatprep.subr.mxu0 0.0
        %244 = vmatpush1.msra.mxu0 0.0
        %245 = vmatprep.subr.mxu0 0.0
        %246 = vmatpush1.msra.mxu0 0.0
        %247 = vmatprep.subr.mxu0 0.0
        %248 = vmatpush1.msra.mxu0 0.0
        %249 = vmatprep.subr.mxu0 0.0
        %250 = vmatpush1.msra.mxu0 0.0
        %251 = vmatprep.subr.mxu0 0.0
        %252 = vmatpush1.msra.mxu0 0.0
        %253 = vmatprep.subr.mxu0 0.0
        %254 = vmatpush1.msra.mxu0 0.0
        %255 = vmatprep.subr.mxu0 0.0
        %256 = vmatpush1.msra.mxu0 0.0
        %257 = vmatprep.subr.mxu0 0.0
        %258 = vmatpush1.msra.mxu0 0.0
        %259 = vmatprep.subr.mxu0 0.0
        %260 = vmatpush1.msra.mxu0 0.0
        %261 = vmatprep.subr.mxu0 0.0
        %262 = vmatpush1.msra.mxu0 0.0
        %263 = vmatprep.subr.mxu0 0.0
        %264 = vmatpush1.msra.mxu0 0.0
        %265 = vmatprep.subr.mxu0 0.0
        %266 = vmatpush1.msra.mxu0 0.0
        %267 = vmatprep.subr.mxu0 0.0
        %268 = vmatpush1.msra.mxu0 0.0
        %269 = vmatprep.subr.mxu0 0.0
        %270 = vmatpush1.msra.mxu0 0.0
        %271 = vmatprep.mubr.f32.mxu0 0.0
        %272 = vmatmul.mubr.f32.gmra.mrb[0].mxu0 %v205
        %v273 = vpop.f32.mrb[0].mxu0
        %v274 = vadd.f32 0.0, %v273
        %v275 = vpop.f32.mrb[0].mxu0
        %276 = vdwg.mxu0
        %v277 = vadd.f32 %v202, %v274
        %vm278 = vcmask 257024
        %279 = vst.msk [vmem:[#allocation2] sm:$0xf] %vm278, %v277
        // Predicated region
        $region41: #{tpu_custom_call.1} parent=27 // pred_check
          %p280 = pneg %p194
        $region42: #{tpu_custom_call.1} parent=27 // pred_check_branch
          %282 = sbr.rel (%p280) target = $region44
        $region43: #{tpu_custom_call.1} parent=27 // pred_region
          %v283 = vld [vmem:[#allocation2] sm:$0xf]
          %284 = vst.msk [vmem:[%s193] sm:$0xf] %vm278, %v283
        $region44: #{tpu_custom_call.1} parent=27 // pred_fallthru
          _
        %s285 = sand.u32 %s94, 1
        %s286 = scalar_lea.sflag [#allocation5], %s285
        %s287 = sand.u32 %s94, 1
        %s288 = smul.addr %s287, 4
        %s289 = scalar_lea.vmem [#allocation8], %s288
        // Predicated region
        $region45: #{tpu_custom_call.1} parent=27 // pred_check
          %p290 = pneg %p104
        $region46: #{tpu_custom_call.1} parent=27 // pred_check_branch
          %292 = sbr.rel (%p290) target = $region48
        $region47: #{tpu_custom_call.1} parent=27 // pred_region
          %s294 = ssub.s32 64, 64
          %295 = vsyncadd %s286, %s294
          %s296 = smul.addr %s24, 64
          %s297 = scalar_lea.hbm %s2, %s296
          %s299 = sshll.u32 %s289, 4
          %s300 = int_to_ptr.vmem [resolvable:$true] %s299
          %302 = dma.vmem_to_hbm [thread:$0]  %s300, 64, %s297, %s286
        $region48: #{tpu_custom_call.1} parent=27 // pred_fallthru
          _
      $region28: #{tpu_custom_call.1} parent=5 // pred_fallthru
        _
      %p303 = scmp.le.s32.totalorder 2, %s15
      // Predicated region
      $region49: #{tpu_custom_call.1} parent=5 // pred_check
        %p304 = pneg %p303
      $region50: #{tpu_custom_call.1} parent=5 // pred_check_branch
        %306 = sbr.rel (%p304) target = $region52
      $region51: #{tpu_custom_call.1} parent=5 // pred_region
        %s307 = ssub.s32 %s15, 2
        // Predicated region
        $region53: #{tpu_custom_call.1} parent=51 // pred_check
          %p308 = pneg %p110
        $region54: #{tpu_custom_call.1} parent=51 // pred_check_branch
          %310 = sbr.rel (%p308) target = $region56
        $region55: #{tpu_custom_call.1} parent=51 // pred_region
          %s311 = sand.u32 %s95, 1
          %s312 = scalar_lea.sflag [#allocation5], %s311
          %s313 = sand.u32 %s95, 1
          %s314 = smul.addr %s313, 4
          %s315 = scalar_lea.vmem [#allocation8], %s314
          %316 = dma.done %s312, 64
        $region56: #{tpu_custom_call.1} parent=51 // pred_fallthru
          _
      $region52: #{tpu_custom_call.1} parent=5 // pred_fallthru
        _
    $region6: #{tpu_custom_call.1} parent=1 // loop_footer
      %s19 = sadd.s32 1, %s15
    $region7: #{tpu_custom_call.1} parent=1 // loop_footer_branch
      %14 = sbr.rel target = $region3
    $region8: #{tpu_custom_call.1} parent=1 // loop_exit
      _
    %317 = vsyncpa [#allocation4], 1
    %s318 = scalar_lea.sflag [#allocation4], 1
    %319 = vsyncpa %s318, 1
    %320 = vsyncpa [#allocation7], 1
    %s321 = scalar_lea.sflag [#allocation7], 1
    %322 = vsyncpa %s321, 1
    %323 = vsyncpa [#allocation5], 1
    %s324 = scalar_lea.sflag [#allocation5], 1
    %325 = vsyncpa %s324, 1

</llo_original>
